<compile_context>
chip_gen: v7x
topology: tpu7x:2x2x1
jax: 0.10.0
libtpu: 0.0.40
codegen_flags: <defaults>
</compile_context>

<pallas_src>
import math
import jax
import jax.numpy as jnp
from jax.experimental import pallas as pl
from jax.experimental.pallas import tpu as pltpu

LANE = 128


def _round_up(n, m):
    return ((n + m - 1) // m) * m


def _imaginator_cstate_kernel(
    s_ref, a_ref,          # [TB, state_dim], [TB, action_dim]  (streamed)
    w1s_ref, w1a_ref,      # fused layer 1, rows split by states / actions
    b12_ref,               # (2, 2H): row0 = bias1, row1 = bias2
    w2_ref,                # (2H, 2H) block-diagonal
    w3_ref,                # (2H, OUT_PAD) block-diagonal, 128-lane padded
    b3cm_ref,              # (3, OUT_PAD): row0 = bias3, row1 = clamp_min, row2 = clamp_max
    out_ref,               # [TB, OUT_PAD]
):
    cdt = w1s_ref.dtype    # compute dtype for the MXU dots (f32 or bf16)

    # Layer 1: x @ W1 without materializing concat(states, actions):
    # two accumulating MXU dots into the same [TB, 2H] result.
    # TODO(synk): could be merged into one K=16 dot via a VMEM staging buffer;
    # kept as two dots since the kernel is HBM/step-overhead bound, not MXU bound.
    h = jnp.dot(s_ref[...].astype(cdt), w1s_ref[...],
                preferred_element_type=jnp.float32)
    h = h + jnp.dot(a_ref[...].astype(cdt), w1a_ref[...],
                    preferred_element_type=jnp.float32)
    h = jnp.maximum(h + b12_ref[0:1, :], 0.0)

    # Layer 2 (block-diagonal keeps state / reward branches independent).
    h = jnp.dot(h.astype(cdt), w2_ref[...], preferred_element_type=jnp.float32)
    h = jnp.maximum(h + b12_ref[1:2, :], 0.0)

    # Layer 3, then clamp. Reward + padding columns have (-inf, +inf) bounds,
    # so min/max is a no-op there and the store stays one unmasked 128-lane slab.
    y = jnp.dot(h.astype(cdt), w3_ref[...], preferred_element_type=jnp.float32)
    y = y + b3cm_ref[0:1, :]
    out_ref[...] = jnp.minimum(jnp.maximum(y, b3cm_ref[1:2, :]), b3cm_ref[2:3, :])


def pack_params(params, state_min, state_max, state_dim, hidden_dim,
                compute_dtype=jnp.float32):
    """Pack per-predictor Linear params into fused, lane-padded kernel params.

    compute_dtype=jnp.bfloat16 is recommended on v5e (MXU f32 passes are slow
    there); it loosens accuracy below ~1e-4, so keep f32 for strict parity.
    """
    sw1, sb1, sw2, sb2, sw3, sb3, rw1, rb1, rw2, rb2, rw3, rb3 = params
    H = hidden_dim
    out_dim = state_dim + 1                       # [next_state_unbound | reward]
    out_pad = _round_up(out_dim, LANE)

    w1 = jnp.concatenate([sw1, rw1], axis=1)      # (in_dim, 2H)
    w1s = w1[:state_dim].astype(compute_dtype)    # (state_dim, 2H)
    w1a = w1[state_dim:].astype(compute_dtype)    # (action_dim, 2H)

    w2 = jnp.zeros((2 * H, 2 * H), jnp.float32)
    w2 = w2.at[:H, :H].set(sw2).at[H:, H:].set(rw2).astype(compute_dtype)

    w3 = jnp.zeros((2 * H, out_pad), jnp.float32)
    w3 = (w3.at[:H, :state_dim].set(sw3)
             .at[H:, state_dim:state_dim + 1].set(rw3)
             .astype(compute_dtype))

    # Biases for layers 1 & 2 stacked into one (2, 2H) f32 array.
    b12 = jnp.concatenate(
        [jnp.concatenate([sb1, rb1], axis=1),
         jnp.concatenate([sb2, rb2], axis=1)], axis=0)

    # Layer-3 bias + per-column clamp bounds in one (3, out_pad) f32 array.
    b3cm = jnp.zeros((3, out_pad), jnp.float32)
    b3cm = b3cm.at[0, :state_dim].set(sb3[0]).at[0, state_dim].set(rb3[0, 0])
    b3cm = b3cm.at[1, :].set(-jnp.inf).at[1, :state_dim].set(
        jnp.asarray(state_min, jnp.float32))
    b3cm = b3cm.at[2, :].set(jnp.inf).at[2, :state_dim].set(
        jnp.asarray(state_max, jnp.float32))

    return (w1s, w1a, b12, w2, w3, b3cm)


def imaginator_cstate_forward_packed(states, actions, packed, tb_cap=2048):
    """Returns the lane-padded [B, 128] output slab.

    Columns [0:state_dim] = clamped next_states, column [state_dim] = rewards.
    Prefer this under jit so downstream consumers fuse the slices (no extra
    pass over the dominant output stream).
    """
    w1s, w1a, b12, w2, w3, b3cm = packed
    B = states.shape[0]
    state_dim = w1s.shape[0]
    action_dim = w1a.shape[0]
    out_pad = w3.shape[1]

    states = states.astype(jnp.float32)
    actions = actions.astype(jnp.float32)

    # Batch tile: big enough to amortize per-grid-step overhead, small enough
    # that the parallel grid has >=2 steps (v7x has 2 TensorCores). TB is a
    # multiple of 8 (sublane constraint); no padding of B — Pallas handles the
    # ragged boundary block (writeback of the OOB tail is masked).
    TB = min(tb_cap, max(8, _round_up(pl.cdiv(B, 2), 8)))
    grid = (pl.cdiv(B, TB),)

    def pinned(arr):
        # Weights resident in VMEM across all grid steps (constant block index).
        return pl.BlockSpec(arr.shape, lambda i: (0, 0))

    grid_spec = pltpu.PrefetchScalarGridSpec(
        num_scalar_prefetch=0,
        grid=grid,
        in_specs=[
            pl.BlockSpec((TB, state_dim), lambda i: (i, 0)),
            pl.BlockSpec((TB, action_dim), lambda i: (i, 0)),
            pinned(w1s), pinned(w1a), pinned(b12),
            pinned(w2), pinned(w3), pinned(b3cm),
        ],
        out_specs=pl.BlockSpec((TB, out_pad), lambda i: (i, 0)),
    )

    return pl.pallas_call(
        _imaginator_cstate_kernel,
        out_shape=jax.ShapeDtypeStruct((B, out_pad), jnp.float32),
        grid_spec=grid_spec,
        compiler_params=pltpu.CompilerParams(
            dimension_semantics=("parallel",)),
    )(states, actions, w1s, w1a, b12, w2, w3, b3cm)


def imaginator_cstate_forward(states, actions, packed):
    """Module-interface wrapper: returns (next_states, None, rewards)."""
    state_dim = packed[0].shape[0]
    out = imaginator_cstate_forward_packed(states, actions, packed)
    next_states = out[:, :state_dim]
    rewards = out[:, state_dim:state_dim + 1]
    return next_states, None, rewards


def _linear_init(key, fan_in, fan_out):
    """Deterministic init mimicking torch.nn.Linear (uniform +-1/sqrt(fan_in)).

    Weights stored as (in, out) so the kernel computes y = x @ W + b.
    """
    kw, kb = jax.random.split(key)
    bound = 1.0 / math.sqrt(fan_in)
    w = jax.random.uniform(kw, (fan_in, fan_out), jnp.float32, -bound, bound)
    b = jax.random.uniform(kb, (1, fan_out), jnp.float32, -bound, bound)
    return w, b


def make_params(key, state_dim, action_dim, hidden_dim):
    in_dim = state_dim + action_dim
    keys = jax.random.split(key, 6)
    sw1, sb1 = _linear_init(keys[0], in_dim, hidden_dim)
    sw2, sb2 = _linear_init(keys[1], hidden_dim, hidden_dim)
    sw3, sb3 = _linear_init(keys[2], hidden_dim, state_dim)
    rw1, rb1 = _linear_init(keys[3], in_dim, hidden_dim)
    rw2, rb2 = _linear_init(keys[4], hidden_dim, hidden_dim)
    rw3, rb3 = _linear_init(keys[5], hidden_dim, 1)
    return (sw1, sb1, sw2, sb2, sw3, sb3, rw1, rb1, rw2, rb2, rw3, rb3)


# TODO(synk): loss_fn (smooth_l1) and training are not part of the forward pass
# and are not implemented as kernels.

if __name__ == "__main__":
    # Small shapes consistent with the module.
    B = 8
    state_dim = 12
    action_dim = 4
    hidden_dim = 32

    key = jax.random.PRNGKey(0)
    k_params, k_states, k_actions = jax.random.split(key, 3)

    params = make_params(k_params, state_dim, action_dim, hidden_dim)
    state_min = [-0.5 + 0.05 * i for i in range(state_dim)]
    state_max = [0.5 + 0.05 * i for i in range(state_dim)]

    packed = pack_params(params, state_min, state_max, state_dim, hidden_dim)

    states = jax.random.normal(k_states, (B, state_dim), jnp.float32)
    actions = jax.random.normal(k_actions, (B, action_dim), jnp.float32)

    next_states, none_out, rewards = imaginator_cstate_forward(states, actions, packed)
    jax.block_until_ready((next_states, rewards))

    # Pure-JAX reference of the same math (unfused, like the PyTorch module).
    sw1, sb1, sw2, sb2, sw3, sb3, rw1, rb1, rw2, rb2, rw3, rb3 = params
    smin = jnp.asarray(state_min, jnp.float32)
    smax = jnp.asarray(state_max, jnp.float32)
    x = jnp.concatenate([states, actions], axis=1)
    h = jnp.maximum(x @ sw1 + sb1, 0.0)
    h = jnp.maximum(h @ sw2 + sb2, 0.0)
    ref_next = jnp.clip(h @ sw3 + sb3, smin[None, :], smax[None, :])
    g = jnp.maximum(x @ rw1 + rb1, 0.0)
    g = jnp.maximum(g @ rw2 + rb2, 0.0)
    ref_rewards = g @ rw3 + rb3

    assert none_out is None
    assert next_states.shape == (B, state_dim)
    assert rewards.shape == (B, 1)
    assert jnp.allclose(next_states, ref_next, atol=1e-4, rtol=1e-4)
    assert jnp.allclose(rewards, ref_rewards, atol=1e-4, rtol=1e-4)

    print("KERNEL_OK")
</pallas_src>

<mosaic_0001>
module attributes {stable_mosaic.version = 11 : i64} {
  func.func @_imaginator_cstate_kernel(%arg0: i32, %arg1: memref<8x12xf32, #tpu.memory_space<vmem>>, %arg2: memref<8x4xf32, #tpu.memory_space<vmem>>, %arg3: memref<12x64xf32, #tpu.memory_space<vmem>>, %arg4: memref<4x64xf32, #tpu.memory_space<vmem>>, %arg5: memref<2x64xf32, #tpu.memory_space<vmem>>, %arg6: memref<64x64xf32, #tpu.memory_space<vmem>>, %arg7: memref<64x128xf32, #tpu.memory_space<vmem>>, %arg8: memref<3x128xf32, #tpu.memory_space<vmem>>, %arg9: memref<8x128xf32, #tpu.memory_space<vmem>>) attributes {dimension_semantics = [#tpu.dimension_semantics<parallel>], iteration_bounds = array<i64: 1>, scalar_prefetch = 0 : i64, scratch_operands = 0 : i64, tpu.core_type = #tpu.core_type<tc>, window_params = [{transform_indices = @transform_0, window_bounds = array<i64: 8, 12>}, {transform_indices = @transform_1, window_bounds = array<i64: 8, 4>}, {pipeline_mode = #tpu.pipeline_mode<synchronous>, transform_indices = @transform_2, window_bounds = array<i64: 12, 64>}, {pipeline_mode = #tpu.pipeline_mode<synchronous>, transform_indices = @transform_3, window_bounds = array<i64: 4, 64>}, {pipeline_mode = #tpu.pipeline_mode<synchronous>, transform_indices = @transform_4, window_bounds = array<i64: 2, 64>}, {pipeline_mode = #tpu.pipeline_mode<synchronous>, transform_indices = @transform_5, window_bounds = array<i64: 64, 64>}, {pipeline_mode = #tpu.pipeline_mode<synchronous>, transform_indices = @transform_6, window_bounds = array<i64: 64, 128>}, {pipeline_mode = #tpu.pipeline_mode<synchronous>, transform_indices = @transform_7, window_bounds = array<i64: 3, 128>}, {transform_indices = @transform_8, window_bounds = array<i64: 8, 128>}]} {
    %c0 = arith.constant 0 : index
    %c0_0 = arith.constant 0 : index
    %0 = vector.load %arg1[%c0, %c0_0] : memref<8x12xf32, #tpu.memory_space<vmem>>, vector<8x12xf32>
    %c0_1 = arith.constant 0 : index
    %c0_2 = arith.constant 0 : index
    %1 = vector.load %arg3[%c0_1, %c0_2] : memref<12x64xf32, #tpu.memory_space<vmem>>, vector<12x64xf32>
    %cst = arith.constant dense<0.000000e+00> : vector<8x64xf32>
    %2 = tpu.matmul %0, %1, %cst {dimension_numbers = #tpu.dot_dimension_numbers<[1], [0], [0], [1], [0, 0, 1, 1], [], []>} : vector<8x12xf32>, vector<12x64xf32>, vector<8x64xf32> -> vector<8x64xf32>
    %c0_3 = arith.constant 0 : index
    %c0_4 = arith.constant 0 : index
    %3 = vector.load %arg2[%c0_3, %c0_4] : memref<8x4xf32, #tpu.memory_space<vmem>>, vector<8x4xf32>
    %c0_5 = arith.constant 0 : index
    %c0_6 = arith.constant 0 : index
    %4 = vector.load %arg4[%c0_5, %c0_6] : memref<4x64xf32, #tpu.memory_space<vmem>>, vector<4x64xf32>
    %cst_7 = arith.constant dense<0.000000e+00> : vector<8x64xf32>
    %5 = tpu.matmul %3, %4, %cst_7 {dimension_numbers = #tpu.dot_dimension_numbers<[1], [0], [0], [1], [0, 0, 1, 1], [], []>} : vector<8x4xf32>, vector<4x64xf32>, vector<8x64xf32> -> vector<8x64xf32>
    %6 = arith.addf %2, %5 : vector<8x64xf32>
    %c0_8 = arith.constant 0 : index
    %c0_9 = arith.constant 0 : index
    %7 = vector.load %arg5[%c0_8, %c0_9] : memref<2x64xf32, #tpu.memory_space<vmem>>, vector<1x64xf32>
    %8 = vector.broadcast %7 : vector<1x64xf32> to vector<8x64xf32>
    %9 = arith.addf %6, %8 : vector<8x64xf32>
    %cst_10 = arith.constant 0.000000e+00 : f32
    %10 = vector.broadcast %cst_10 : f32 to vector<8x64xf32>
    %11 = arith.maximumf %9, %10 : vector<8x64xf32>
    %c0_11 = arith.constant 0 : index
    %c0_12 = arith.constant 0 : index
    %12 = vector.load %arg6[%c0_11, %c0_12] : memref<64x64xf32, #tpu.memory_space<vmem>>, vector<64x64xf32>
    %cst_13 = arith.constant dense<0.000000e+00> : vector<8x64xf32>
    %13 = tpu.matmul %11, %12, %cst_13 {dimension_numbers = #tpu.dot_dimension_numbers<[1], [0], [0], [1], [0, 0, 1, 1], [], []>} : vector<8x64xf32>, vector<64x64xf32>, vector<8x64xf32> -> vector<8x64xf32>
    %c1 = arith.constant 1 : index
    %c0_14 = arith.constant 0 : index
    %14 = vector.load %arg5[%c1, %c0_14] : memref<2x64xf32, #tpu.memory_space<vmem>>, vector<1x64xf32>
    %15 = vector.broadcast %14 : vector<1x64xf32> to vector<8x64xf32>
    %16 = arith.addf %13, %15 : vector<8x64xf32>
    %cst_15 = arith.constant 0.000000e+00 : f32
    %17 = vector.broadcast %cst_15 : f32 to vector<8x64xf32>
    %18 = arith.maximumf %16, %17 : vector<8x64xf32>
    %c0_16 = arith.constant 0 : index
    %c0_17 = arith.constant 0 : index
    %19 = vector.load %arg7[%c0_16, %c0_17] : memref<64x128xf32, #tpu.memory_space<vmem>>, vector<64x128xf32>
    %cst_18 = arith.constant dense<0.000000e+00> : vector<8x128xf32>
    %20 = tpu.matmul %18, %19, %cst_18 {dimension_numbers = #tpu.dot_dimension_numbers<[1], [0], [0], [1], [0, 0, 1, 1], [], []>} : vector<8x64xf32>, vector<64x128xf32>, vector<8x128xf32> -> vector<8x128xf32>
    %c0_19 = arith.constant 0 : index
    %c0_20 = arith.constant 0 : index
    %21 = vector.load %arg8[%c0_19, %c0_20] : memref<3x128xf32, #tpu.memory_space<vmem>>, vector<1x128xf32>
    %22 = vector.broadcast %21 : vector<1x128xf32> to vector<8x128xf32>
    %23 = arith.addf %20, %22 : vector<8x128xf32>
    %c1_21 = arith.constant 1 : index
    %c0_22 = arith.constant 0 : index
    %24 = vector.load %arg8[%c1_21, %c0_22] : memref<3x128xf32, #tpu.memory_space<vmem>>, vector<1x128xf32>
    %25 = vector.broadcast %24 : vector<1x128xf32> to vector<8x128xf32>
    %26 = arith.maximumf %23, %25 : vector<8x128xf32>
    %c2 = arith.constant 2 : index
    %c0_23 = arith.constant 0 : index
    %27 = vector.load %arg8[%c2, %c0_23] : memref<3x128xf32, #tpu.memory_space<vmem>>, vector<1x128xf32>
    %28 = vector.broadcast %27 : vector<1x128xf32> to vector<8x128xf32>
    %29 = arith.minimumf %26, %28 : vector<8x128xf32>
    %c0_24 = arith.constant 0 : index
    %c0_25 = arith.constant 0 : index
    %30 = vector.load %arg9[%c0_24, %c0_25] : memref<8x128xf32, #tpu.memory_space<vmem>>, vector<8x128xf32>
    tpu.vector_store %arg9[%c0_24, %c0_25], %29 {strides = array<i32>} : memref<8x128xf32, #tpu.memory_space<vmem>>, vector<8x128xf32>,
    return
  }
  func.func @transform_0(%arg0: i32) -> (i32, i32) {
    %c0_i32 = arith.constant 0 : i32
    %c0_i32_0 = arith.constant 0 : i32
    return %arg0, %c0_i32 : i32, i32
  }
  func.func @transform_1(%arg0: i32) -> (i32, i32) {
    %c0_i32 = arith.constant 0 : i32
    %c0_i32_0 = arith.constant 0 : i32
    return %arg0, %c0_i32 : i32, i32
  }
  func.func @transform_2(%arg0: i32) -> (i32, i32) {
    %c0_i32 = arith.constant 0 : i32
    %c0_i32_0 = arith.constant 0 : i32
    %c0_i32_1 = arith.constant 0 : i32
    return %c0_i32, %c0_i32_0 : i32, i32
  }
  func.func @transform_3(%arg0: i32) -> (i32, i32) {
    %c0_i32 = arith.constant 0 : i32
    %c0_i32_0 = arith.constant 0 : i32
    %c0_i32_1 = arith.constant 0 : i32
    return %c0_i32, %c0_i32_0 : i32, i32
  }
  func.func @transform_4(%arg0: i32) -> (i32, i32) {
    %c0_i32 = arith.constant 0 : i32
    %c0_i32_0 = arith.constant 0 : i32
    %c0_i32_1 = arith.constant 0 : i32
    return %c0_i32, %c0_i32_0 : i32, i32
  }
  func.func @transform_5(%arg0: i32) -> (i32, i32) {
    %c0_i32 = arith.constant 0 : i32
    %c0_i32_0 = arith.constant 0 : i32
    %c0_i32_1 = arith.constant 0 : i32
    return %c0_i32, %c0_i32_0 : i32, i32
  }
  func.func @transform_6(%arg0: i32) -> (i32, i32) {
    %c0_i32 = arith.constant 0 : i32
    %c0_i32_0 = arith.constant 0 : i32
    %c0_i32_1 = arith.constant 0 : i32
    return %c0_i32, %c0_i32_0 : i32, i32
  }
  func.func @transform_7(%arg0: i32) -> (i32, i32) {
    %c0_i32 = arith.constant 0 : i32
    %c0_i32_0 = arith.constant 0 : i32
    %c0_i32_1 = arith.constant 0 : i32
    return %c0_i32, %c0_i32_0 : i32, i32
  }
  func.func @transform_8(%arg0: i32) -> (i32, i32) {
    %c0_i32 = arith.constant 0 : i32
    %c0_i32_0 = arith.constant 0 : i32
    return %arg0, %c0_i32 : i32, i32
  }
}

</mosaic_0001>

<llo_original>
// kernel: tpu_custom_call.1
$region0: #{tpu_custom_call.1}
  #allocation0 [shape = 'u32[]', space=smem, size = 0x4, offset = 0x4, fixed_abs, tag = 'smem constant byte address 0x4 - core index']
  #allocation1 [shape = 'u32[144,128]{1,0:T(1,128)}', space=vmem, size = 0x12000, scoped, tag = 'internal scratch']
  %s0 = inlined_call_operand.hbm [shape: f32[8,12], index: 0, kind: input, shape index: {}]
  %s1 = inlined_call_operand.vmem [shape: f32[8,4], index: 1, kind: input, shape index: {}]
  %s2 = inlined_call_operand.vmem [shape: f32[12,64], index: 2, kind: input, shape index: {}]
  %s3 = inlined_call_operand.vmem [shape: f32[4,64], index: 3, kind: input, shape index: {}]
  %s4 = inlined_call_operand.vmem [shape: f32[2,64], index: 4, kind: input, shape index: {}]
  %s5 = inlined_call_operand.hbm [shape: f32[64,64], index: 5, kind: input, shape index: {}]
  %s6 = inlined_call_operand.hbm [shape: f32[64,128], index: 6, kind: input, shape index: {}]
  %s7 = inlined_call_operand.vmem [shape: f32[3,128], index: 7, kind: input, shape index: {}]
  %s8 = inlined_call_operand.hbm [shape: f32[8,128], index: 8, kind: output, shape index: {}]
  %s9 = sld [smem:[#allocation0]]
  $region54: #{tpu_custom_call.1} parent=0
    _
  %s11 = ssub.s32 1, %s9
  %s12 = scalar_select 0, %s11, %s9
  $region1: #{tpu_custom_call.1} parent=0
    #allocation2 [shape = 'u8[4096]{0}', space=vmem, size = 0x1000, scoped, tag = 'input window, operand 0, single buffered']
    #allocation3 [shape = 's32[1]{0}', space=sflag, size = 0x4, scoped, tag = 'scoped memory for tpu_custom_call.1']
    #allocation4 [shape = 's32[1]{0}', space=sflag, size = 0x4, scoped, tag = 'scoped memory for tpu_custom_call.1']
    #allocation5 [shape = 'u8[32768]{0}', space=vmem, size = 0x8000, scoped, tag = 'input window, operand 5, single buffered']
    #allocation6 [shape = 's32[1]{0}', space=sflag, size = 0x4, scoped, tag = 'scoped memory for tpu_custom_call.1']
    #allocation7 [shape = 'u8[32768]{0}', space=vmem, size = 0x8000, scoped, tag = 'input window, operand 6, single buffered']
    #allocation8 [shape = 'u8[4096]{0}', space=vmem, size = 0x1000, scoped, tag = 'output window, operand 0, single buffered']
    %13 = vsyncpa [#allocation3], 0
    %14 = vsyncpa [#allocation6], 0
    %15 = vsyncpa [#allocation4], 0
    // Predicated region
    $region2: #{tpu_custom_call.1} parent=1 // pred_check
      _
    $region3: #{tpu_custom_call.1} parent=1 // pred_check_branch
      %17 = sbr.rel (0) target = $region5
    $region4: #{tpu_custom_call.1} parent=1 // pred_region
      %s19 = ssub.s32 128, 128
      %20 = vsyncadd [#allocation3], %s19
      %s22 = sshll.u32 [#allocation2], 4
      %s23 = int_to_ptr.vmem [resolvable:$true] %s22
      %25 = dma.hbm_to_vmem [thread:$0]  %s0, 128, %s23, [#allocation3]
    $region5: #{tpu_custom_call.1} parent=1 // pred_fallthru
      _
    // Predicated region
    $region6: #{tpu_custom_call.1} parent=1 // pred_check
      _
    $region7: #{tpu_custom_call.1} parent=1 // pred_check_branch
      %27 = sbr.rel (0) target = $region9
    $region8: #{tpu_custom_call.1} parent=1 // pred_region
      _
    $region9: #{tpu_custom_call.1} parent=1 // pred_fallthru
      _
    // Predicated region
    $region10: #{tpu_custom_call.1} parent=1 // pred_check
      _
    $region11: #{tpu_custom_call.1} parent=1 // pred_check_branch
      %29 = sbr.rel (0) target = $region13
    $region12: #{tpu_custom_call.1} parent=1 // pred_region
      _
    $region13: #{tpu_custom_call.1} parent=1 // pred_fallthru
      _
    // Predicated region
    $region14: #{tpu_custom_call.1} parent=1 // pred_check
      _
    $region15: #{tpu_custom_call.1} parent=1 // pred_check_branch
      %31 = sbr.rel (0) target = $region17
    $region16: #{tpu_custom_call.1} parent=1 // pred_region
      _
    $region17: #{tpu_custom_call.1} parent=1 // pred_fallthru
      _
    // Predicated region
    $region18: #{tpu_custom_call.1} parent=1 // pred_check
      _
    $region19: #{tpu_custom_call.1} parent=1 // pred_check_branch
      %33 = sbr.rel (0) target = $region21
    $region20: #{tpu_custom_call.1} parent=1 // pred_region
      _
    $region21: #{tpu_custom_call.1} parent=1 // pred_fallthru
      _
    // Predicated region
    $region22: #{tpu_custom_call.1} parent=1 // pred_check
      _
    $region23: #{tpu_custom_call.1} parent=1 // pred_check_branch
      %35 = sbr.rel (0) target = $region25
    $region24: #{tpu_custom_call.1} parent=1 // pred_region
      %s37 = ssub.s32 1024, 1024
      %38 = vsyncadd [#allocation6], %s37
      %s39 = sshll.u32 [#allocation5], 4
      %s40 = int_to_ptr.vmem [resolvable:$true] %s39
      %45 = dma.hbm_to_vmem [thread:$0]  %s5, 1024, %s40, [#allocation6], 128, 128, 8
    $region25: #{tpu_custom_call.1} parent=1 // pred_fallthru
      _
    // Predicated region
    $region26: #{tpu_custom_call.1} parent=1 // pred_check
      _
    $region27: #{tpu_custom_call.1} parent=1 // pred_check_branch
      %47 = sbr.rel (0) target = $region29
    $region28: #{tpu_custom_call.1} parent=1 // pred_region
      %s49 = ssub.s32 1024, 1024
      %50 = vsyncadd [#allocation6], %s49
      %s51 = sshll.u32 [#allocation7], 4
      %s52 = int_to_ptr.vmem [resolvable:$true] %s51
      %57 = dma.hbm_to_vmem [thread:$0]  %s6, 1024, %s52, [#allocation6], 128, 128, 8
    $region29: #{tpu_custom_call.1} parent=1 // pred_fallthru
      _
    // Predicated region
    $region30: #{tpu_custom_call.1} parent=1 // pred_check
      _
    $region31: #{tpu_custom_call.1} parent=1 // pred_check_branch
      %59 = sbr.rel (0) target = $region33
    $region32: #{tpu_custom_call.1} parent=1 // pred_region
      _
    $region33: #{tpu_custom_call.1} parent=1 // pred_fallthru
      _
    // Predicated region
    $region34: #{tpu_custom_call.1} parent=1 // pred_check
      _
    $region35: #{tpu_custom_call.1} parent=1 // pred_check_branch
      %61 = sbr.rel (0) target = $region37
    $region36: #{tpu_custom_call.1} parent=1 // pred_region
      %62 = dma.done [#allocation3], 128
    $region37: #{tpu_custom_call.1} parent=1 // pred_fallthru
      _
    // Predicated region
    $region38: #{tpu_custom_call.1} parent=1 // pred_check
      _
    $region39: #{tpu_custom_call.1} parent=1 // pred_check_branch
      %64 = sbr.rel (0) target = $region41
    $region40: #{tpu_custom_call.1} parent=1 // pred_region
      %65 = dma.done [#allocation6], 1024
    $region41: #{tpu_custom_call.1} parent=1 // pred_fallthru
      _
    // Predicated region
    $region42: #{tpu_custom_call.1} parent=1 // pred_check
      _
    $region43: #{tpu_custom_call.1} parent=1 // pred_check_branch
      %67 = sbr.rel (0) target = $region45
    $region44: #{tpu_custom_call.1} parent=1 // pred_region
      %68 = dma.done [#allocation6], 1024
    $region45: #{tpu_custom_call.1} parent=1 // pred_fallthru
      _
    %v69 = vld [vmem:[#allocation2] sm:$0xff]
    %v70 = vld [vmem:[%s2] sm:$0xff]
    %v71 = vld [vmem:[%s2 + $0x8] sm:$0xf]
    %v72 = vld [vmem:[%s1] sm:$0xff]
    %v73 = vld [vmem:[%s3] sm:$0xf]
    %vm74 = vcmask 31744
    %v76 = vsel %vm74, %v72, 0
    %vm78 = vcmask 1043456
    %v80 = vsel %vm78, %v73, 0
    %82 = vmatprep.subr.mxu0 0.0
    %83 = vmatpush1.msra.mxu0 %v80
    %84 = vmatprep.subr.mxu0 0.0
    %85 = vmatpush1.msra.mxu0 0.0
    %86 = vmatprep.subr.mxu0 0.0
    %87 = vmatpush1.msra.mxu0 0.0
    %88 = vmatprep.subr.mxu0 0.0
    %89 = vmatpush1.msra.mxu0 0.0
    %90 = vmatprep.subr.mxu0 0.0
    %91 = vmatpush1.msra.mxu0 0.0
    %92 = vmatprep.subr.mxu0 0.0
    %93 = vmatpush1.msra.mxu0 0.0
    %94 = vmatprep.subr.mxu0 0.0
    %95 = vmatpush1.msra.mxu0 0.0
    %96 = vmatprep.subr.mxu0 0.0
    %97 = vmatpush1.msra.mxu0 0.0
    %98 = vmatprep.subr.mxu0 0.0
    %99 = vmatpush1.msra.mxu0 0.0
    %100 = vmatprep.subr.mxu0 0.0
    %101 = vmatpush1.msra.mxu0 0.0
    %102 = vmatprep.subr.mxu0 0.0
    %103 = vmatpush1.msra.mxu0 0.0
    %104 = vmatprep.subr.mxu0 0.0
    %105 = vmatpush1.msra.mxu0 0.0
    %106 = vmatprep.subr.mxu0 0.0
    %107 = vmatpush1.msra.mxu0 0.0
    %108 = vmatprep.subr.mxu0 0.0
    %109 = vmatpush1.msra.mxu0 0.0
    %110 = vmatprep.subr.mxu0 0.0
    %111 = vmatpush1.msra.mxu0 0.0
    %112 = vmatprep.subr.mxu0 0.0
    %113 = vmatpush1.msra.mxu0 0.0
    %114 = vmatprep.subr.mxu0 0.0
    %115 = vmatpush1.msra.mxu0 0.0
    %116 = vmatprep.subr.mxu0 0.0
    %117 = vmatpush1.msra.mxu0 0.0
    %118 = vmatprep.subr.mxu0 0.0
    %119 = vmatpush1.msra.mxu0 0.0
    %120 = vmatprep.subr.mxu0 0.0
    %121 = vmatpush1.msra.mxu0 0.0
    %122 = vmatprep.subr.mxu0 0.0
    %123 = vmatpush1.msra.mxu0 0.0
    %124 = vmatprep.subr.mxu0 0.0
    %125 = vmatpush1.msra.mxu0 0.0
    %126 = vmatprep.subr.mxu0 0.0
    %127 = vmatpush1.msra.mxu0 0.0
    %128 = vmatprep.subr.mxu0 0.0
    %129 = vmatpush1.msra.mxu0 0.0
    %130 = vmatprep.subr.mxu0 0.0
    %131 = vmatpush1.msra.mxu0 0.0
    %132 = vmatprep.subr.mxu0 0.0
    %133 = vmatpush1.msra.mxu0 0.0
    %134 = vmatprep.subr.mxu0 0.0
    %135 = vmatpush1.msra.mxu0 0.0
    %136 = vmatprep.subr.mxu0 0.0
    %137 = vmatpush1.msra.mxu0 0.0
    %138 = vmatprep.subr.mxu0 0.0
    %139 = vmatpush1.msra.mxu0 0.0
    %140 = vmatprep.subr.mxu0 0.0
    %141 = vmatpush1.msra.mxu0 0.0
    %142 = vmatprep.subr.mxu0 0.0
    %143 = vmatpush1.msra.mxu0 0.0
    %144 = vmatprep.subr.mxu0 0.0
    %145 = vmatpush1.msra.mxu0 0.0
    %146 = vmatprep.mubr.f32.mxu0 0.0
    %147 = vmatmul.mubr.f32.gmra.mrb[0].mxu0 %v76
    %v148 = vpop.f32.mrb[0].mxu0
    %v149 = vadd.f32 0.0, %v148
    %v150 = vpop.f32.mrb[0].mxu0
    %151 = vdwg.mxu0
    %vm152 = vcmask 97280
    %v154 = vsel %vm152, %v69, 0
    %v157 = vsel %vm78, %v71, 0
    %159 = vmatprep.subr.mxu0 0.0
    %160 = vmatpush1.msra.mxu0 %v70
    %161 = vmatprep.subr.mxu0 0.0
    %162 = vmatpush1.msra.mxu0 %v157
    %163 = vmatprep.subr.mxu0 0.0
    %164 = vmatpush1.msra.mxu0 0.0
    %165 = vmatprep.subr.mxu0 0.0
    %166 = vmatpush1.msra.mxu0 0.0
    %167 = vmatprep.subr.mxu0 0.0
    %168 = vmatpush1.msra.mxu0 0.0
    %169 = vmatprep.subr.mxu0 0.0
    %170 = vmatpush1.msra.mxu0 0.0
    %171 = vmatprep.subr.mxu0 0.0
    %172 = vmatpush1.msra.mxu0 0.0
    %173 = vmatprep.subr.mxu0 0.0
    %174 = vmatpush1.msra.mxu0 0.0
    %175 = vmatprep.subr.mxu0 0.0
    %176 = vmatpush1.msra.mxu0 0.0
    %177 = vmatprep.subr.mxu0 0.0
    %178 = vmatpush1.msra.mxu0 0.0
    %179 = vmatprep.subr.mxu0 0.0
    %180 = vmatpush1.msra.mxu0 0.0
    %181 = vmatprep.subr.mxu0 0.0
    %182 = vmatpush1.msra.mxu0 0.0
    %183 = vmatprep.subr.mxu0 0.0
    %184 = vmatpush1.msra.mxu0 0.0
    %185 = vmatprep.subr.mxu0 0.0
    %186 = vmatpush1.msra.mxu0 0.0
    %187 = vmatprep.subr.mxu0 0.0
    %188 = vmatpush1.msra.mxu0 0.0
    %189 = vmatprep.subr.mxu0 0.0
    %190 = vmatpush1.msra.mxu0 0.0
    %191 = vmatprep.subr.mxu0 0.0
    %192 = vmatpush1.msra.mxu0 0.0
    %193 = vmatprep.subr.mxu0 0.0
    %194 = vmatpush1.msra.mxu0 0.0
    %195 = vmatprep.subr.mxu0 0.0
    %196 = vmatpush1.msra.mxu0 0.0
    %197 = vmatprep.subr.mxu0 0.0
    %198 = vmatpush1.msra.mxu0 0.0
    %199 = vmatprep.subr.mxu0 0.0
    %200 = vmatpush1.msra.mxu0 0.0
    %201 = vmatprep.subr.mxu0 0.0
    %202 = vmatpush1.msra.mxu0 0.0
    %203 = vmatprep.subr.mxu0 0.0
    %204 = vmatpush1.msra.mxu0 0.0
    %205 = vmatprep.subr.mxu0 0.0
    %206 = vmatpush1.msra.mxu0 0.0
    %207 = vmatprep.subr.mxu0 0.0
    %208 = vmatpush1.msra.mxu0 0.0
    %209 = vmatprep.subr.mxu0 0.0
    %210 = vmatpush1.msra.mxu0 0.0
    %211 = vmatprep.subr.mxu0 0.0
    %212 = vmatpush1.msra.mxu0 0.0
    %213 = vmatprep.subr.mxu0 0.0
    %214 = vmatpush1.msra.mxu0 0.0
    %215 = vmatprep.subr.mxu0 0.0
    %216 = vmatpush1.msra.mxu0 0.0
    %217 = vmatprep.subr.mxu0 0.0
    %218 = vmatpush1.msra.mxu0 0.0
    %219 = vmatprep.subr.mxu0 0.0
    %220 = vmatpush1.msra.mxu0 0.0
    %221 = vmatprep.subr.mxu0 0.0
    %222 = vmatpush1.msra.mxu0 0.0
    %223 = vmatprep.mubr.f32.mxu0 0.0
    %224 = vmatmul.mubr.f32.gmra.mrb[0].mxu0 %v154
    %v225 = vpop.f32.mrb[0].mxu0
    %v226 = vadd.f32 %v149, %v225
    %v227 = vpop.f32.mrb[0].mxu0
    %228 = vdwg.mxu0
    %v229 = vld [vmem:[%s4] sm:$0x1]
    %v230 = vlaneseq
    %v231 = vshrl.u32 %v230, 7
    %v232 = vsub.s32 0, %v231
    %v233 = vrot.slane %v229, %v232
    %v234 = vadd.f32 %v226, %v233
    %v235 = vmax.f32 %v234, 0.0
    %v236 = vld [vmem:[#allocation5] sm:$0xff]
    %v237 = vld [vmem:[#allocation5 + $0x8] sm:$0xff]
    %v238 = vld [vmem:[#allocation5 + $0x10] sm:$0xff]
    %v239 = vld [vmem:[#allocation5 + $0x18] sm:$0xff]
    %v240 = vld [vmem:[#allocation5 + $0x20] sm:$0xff]
    %v241 = vld [vmem:[#allocation5 + $0x28] sm:$0xff]
    %v242 = vld [vmem:[#allocation5 + $0x30] sm:$0xff]
    %v243 = vld [vmem:[#allocation5 + $0x38] sm:$0xff]
    %v244 = vld [vmem:[%s4 + $0x1] sm:$0x1]
    %v245 = vlaneseq
    %v246 = vshrl.u32 %v245, 7
    %v247 = vsub.s32 0, %v246
    %v248 = vrot.slane %v244, %v247
    %vm249 = vcmask 523264
    %v251 = vsel %vm249, %v235, 0
    %253 = vmatprep.subr.mxu0 0.0
    %254 = vmatpush1.msra.mxu0 %v236
    %255 = vmatprep.subr.mxu0 0.0
    %256 = vmatpush1.msra.mxu0 %v237
    %257 = vmatprep.subr.mxu0 0.0
    %258 = vmatpush1.msra.mxu0 %v238
    %259 = vmatprep.subr.mxu0 0.0
    %260 = vmatpush1.msra.mxu0 %v239
    %261 = vmatprep.subr.mxu0 0.0
    %262 = vmatpush1.msra.mxu0 %v240
    %263 = vmatprep.subr.mxu0 0.0
    %264 = vmatpush1.msra.mxu0 %v241
    %265 = vmatprep.subr.mxu0 0.0
    %266 = vmatpush1.msra.mxu0 %v242
    %267 = vmatprep.subr.mxu0 0.0
    %268 = vmatpush1.msra.mxu0 %v243
    %269 = vmatprep.subr.mxu0 0.0
    %270 = vmatpush1.msra.mxu0 0.0
    %271 = vmatprep.subr.mxu0 0.0
    %272 = vmatpush1.msra.mxu0 0.0
    %273 = vmatprep.subr.mxu0 0.0
    %274 = vmatpush1.msra.mxu0 0.0
    %275 = vmatprep.subr.mxu0 0.0
    %276 = vmatpush1.msra.mxu0 0.0
    %277 = vmatprep.subr.mxu0 0.0
    %278 = vmatpush1.msra.mxu0 0.0
    %279 = vmatprep.subr.mxu0 0.0
    %280 = vmatpush1.msra.mxu0 0.0
    %281 = vmatprep.subr.mxu0 0.0
    %282 = vmatpush1.msra.mxu0 0.0
    %283 = vmatprep.subr.mxu0 0.0
    %284 = vmatpush1.msra.mxu0 0.0
    %285 = vmatprep.subr.mxu0 0.0
    %286 = vmatpush1.msra.mxu0 0.0
    %287 = vmatprep.subr.mxu0 0.0
    %288 = vmatpush1.msra.mxu0 0.0
    %289 = vmatprep.subr.mxu0 0.0
    %290 = vmatpush1.msra.mxu0 0.0
    %291 = vmatprep.subr.mxu0 0.0
    %292 = vmatpush1.msra.mxu0 0.0
    %293 = vmatprep.subr.mxu0 0.0
    %294 = vmatpush1.msra.mxu0 0.0
    %295 = vmatprep.subr.mxu0 0.0
    %296 = vmatpush1.msra.mxu0 0.0
    %297 = vmatprep.subr.mxu0 0.0
    %298 = vmatpush1.msra.mxu0 0.0
    %299 = vmatprep.subr.mxu0 0.0
    %300 = vmatpush1.msra.mxu0 0.0
    %301 = vmatprep.subr.mxu0 0.0
    %302 = vmatpush1.msra.mxu0 0.0
    %303 = vmatprep.subr.mxu0 0.0
    %304 = vmatpush1.msra.mxu0 0.0
    %305 = vmatprep.subr.mxu0 0.0
    %306 = vmatpush1.msra.mxu0 0.0
    %307 = vmatprep.subr.mxu0 0.0
    %308 = vmatpush1.msra.mxu0 0.0
    %309 = vmatprep.subr.mxu0 0.0
    %310 = vmatpush1.msra.mxu0 0.0
    %311 = vmatprep.subr.mxu0 0.0
    %312 = vmatpush1.msra.mxu0 0.0
    %313 = vmatprep.subr.mxu0 0.0
    %314 = vmatpush1.msra.mxu0 0.0
    %315 = vmatprep.subr.mxu0 0.0
    %316 = vmatpush1.msra.mxu0 0.0
    %317 = vmatprep.mubr.f32.mxu0 0.0
    %318 = vmatmul.mubr.f32.gmra.mrb[0].mxu0 %v251
    %v319 = vpop.f32.mrb[0].mxu0
    %v320 = vadd.f32 %v248, %v319
    %v321 = vpop.f32.mrb[0].mxu0
    %322 = vdwg.mxu0
    %v323 = vmax.f32 %v320, 0.0
    %v324 = vld [vmem:[#allocation7] sm:$0xff]
    %v325 = vld [vmem:[#allocation7 + $0x8] sm:$0xff]
    %v326 = vld [vmem:[#allocation7 + $0x10] sm:$0xff]
    %v327 = vld [vmem:[#allocation7 + $0x18] sm:$0xff]
    %v328 = vld [vmem:[#allocation7 + $0x20] sm:$0xff]
    %v329 = vld [vmem:[#allocation7 + $0x28] sm:$0xff]
    %v330 = vld [vmem:[#allocation7 + $0x30] sm:$0xff]
    %v331 = vld [vmem:[#allocation7 + $0x38] sm:$0xff]
    %v332 = vld [vmem:[%s7] sm:$0x1]
    %v333 = vlaneseq
    %v334 = vshrl.u32 %v333, 7
    %v335 = vsub.s32 0, %v334
    %v336 = vrot.slane %v332, %v335
    %v338 = vsel %vm249, %v323, 0
    %340 = vmatprep.subr.mxu0 0.0
    %341 = vmatpush1.msra.mxu0 %v324
    %342 = vmatprep.subr.mxu0 0.0
    %343 = vmatpush1.msra.mxu0 %v325
    %344 = vmatprep.subr.mxu0 0.0
    %345 = vmatpush1.msra.mxu0 %v326
    %346 = vmatprep.subr.mxu0 0.0
    %347 = vmatpush1.msra.mxu0 %v327
    %348 = vmatprep.subr.mxu0 0.0
    %349 = vmatpush1.msra.mxu0 %v328
    %350 = vmatprep.subr.mxu0 0.0
    %351 = vmatpush1.msra.mxu0 %v329
    %352 = vmatprep.subr.mxu0 0.0
    %353 = vmatpush1.msra.mxu0 %v330
    %354 = vmatprep.subr.mxu0 0.0
    %355 = vmatpush1.msra.mxu0 %v331
    %356 = vmatprep.subr.mxu0 0.0
    %357 = vmatpush1.msra.mxu0 0.0
    %358 = vmatprep.subr.mxu0 0.0
    %359 = vmatpush1.msra.mxu0 0.0
    %360 = vmatprep.subr.mxu0 0.0
    %361 = vmatpush1.msra.mxu0 0.0
    %362 = vmatprep.subr.mxu0 0.0
    %363 = vmatpush1.msra.mxu0 0.0
    %364 = vmatprep.subr.mxu0 0.0
    %365 = vmatpush1.msra.mxu0 0.0
    %366 = vmatprep.subr.mxu0 0.0
    %367 = vmatpush1.msra.mxu0 0.0
    %368 = vmatprep.subr.mxu0 0.0
    %369 = vmatpush1.msra.mxu0 0.0
    %370 = vmatprep.subr.mxu0 0.0
    %371 = vmatpush1.msra.mxu0 0.0
    %372 = vmatprep.subr.mxu0 0.0
    %373 = vmatpush1.msra.mxu0 0.0
    %374 = vmatprep.subr.mxu0 0.0
    %375 = vmatpush1.msra.mxu0 0.0
    %376 = vmatprep.subr.mxu0 0.0
    %377 = vmatpush1.msra.mxu0 0.0
    %378 = vmatprep.subr.mxu0 0.0
    %379 = vmatpush1.msra.mxu0 0.0
    %380 = vmatprep.subr.mxu0 0.0
    %381 = vmatpush1.msra.mxu0 0.0
    %382 = vmatprep.subr.mxu0 0.0
    %383 = vmatpush1.msra.mxu0 0.0
    %384 = vmatprep.subr.mxu0 0.0
    %385 = vmatpush1.msra.mxu0 0.0
    %386 = vmatprep.subr.mxu0 0.0
    %387 = vmatpush1.msra.mxu0 0.0
    %388 = vmatprep.subr.mxu0 0.0
    %389 = vmatpush1.msra.mxu0 0.0
    %390 = vmatprep.subr.mxu0 0.0
    %391 = vmatpush1.msra.mxu0 0.0
    %392 = vmatprep.subr.mxu0 0.0
    %393 = vmatpush1.msra.mxu0 0.0
    %394 = vmatprep.subr.mxu0 0.0
    %395 = vmatpush1.msra.mxu0 0.0
    %396 = vmatprep.subr.mxu0 0.0
    %397 = vmatpush1.msra.mxu0 0.0
    %398 = vmatprep.subr.mxu0 0.0
    %399 = vmatpush1.msra.mxu0 0.0
    %400 = vmatprep.subr.mxu0 0.0
    %401 = vmatpush1.msra.mxu0 0.0
    %402 = vmatprep.subr.mxu0 0.0
    %403 = vmatpush1.msra.mxu0 0.0
    %404 = vmatprep.mubr.f32.mxu0 0.0
    %405 = vmatmul.mubr.f32.gmra.mrb[0].mxu0 %v338
    %v406 = vpop.f32.mrb[0].mxu0
    %v407 = vadd.f32 %v336, %v406
    %v408 = vpop.f32.mrb[0].mxu0
    %409 = vdwg.mxu0
    %v410 = vld [vmem:[%s7 + $0x1] sm:$0x1]
    %v411 = vlaneseq
    %v412 = vshrl.u32 %v411, 7
    %v413 = vsub.s32 0, %v412
    %v414 = vrot.slane %v410, %v413
    %v415 = vmax.f32 %v407, %v414
    %v416 = vld [vmem:[%s7 + $0x2] sm:$0x1]
    %v417 = vlaneseq
    %v418 = vshrl.u32 %v417, 7
    %v419 = vsub.s32 0, %v418
    %v420 = vrot.slane %v416, %v419
    %v421 = vmin.f32 %v415, %v420
    %422 = vst [vmem:[#allocation8] sm:$0xff] %v421
    // Predicated region
    $region46: #{tpu_custom_call.1} parent=1 // pred_check
      _
    $region47: #{tpu_custom_call.1} parent=1 // pred_check_branch
      %424 = sbr.rel (0) target = $region49
    $region48: #{tpu_custom_call.1} parent=1 // pred_region
      %s426 = ssub.s32 128, 128
      %427 = vsyncadd [#allocation4], %s426
      %s429 = sshll.u32 [#allocation8], 4
      %s430 = int_to_ptr.vmem [resolvable:$true] %s429
      %432 = dma.vmem_to_hbm [thread:$0]  %s430, 128, %s8, [#allocation4]
    $region49: #{tpu_custom_call.1} parent=1 // pred_fallthru
      _
    // Predicated region
    $region50: #{tpu_custom_call.1} parent=1 // pred_check
      _
    $region51: #{tpu_custom_call.1} parent=1 // pred_check_branch
      %434 = sbr.rel (0) target = $region53
    $region52: #{tpu_custom_call.1} parent=1 // pred_region
      %435 = dma.done [#allocation4], 128
    $region53: #{tpu_custom_call.1} parent=1 // pred_fallthru
      _
    %436 = vsyncpa [#allocation3], 1
    %437 = vsyncpa [#allocation6], 1
    %438 = vsyncpa [#allocation4], 1

</llo_original>
